<compile_context>
chip_gen: v5e
topology: v5e:2x2
jax: 0.10.0
libtpu: 0.0.40
codegen_flags: <defaults>
</compile_context>

<pallas_src>
import functools

import jax
import jax.numpy as jnp
from jax.experimental import pallas as pl
from jax.experimental.pallas import tpu as pltpu


def _round_up(a, m):
    return (a + m - 1) // m * m


def _feed_dtype():
    # bf16 MXU feeds only on a real TPU backend; f32 elsewhere so the
    # CPU-interpret DotThunk (no BF16xBF16=F32 support) still executes.
    try:
        if jax.default_backend() == "tpu":
            return jnp.bfloat16
    except Exception:
        pass
    return jnp.float32


def _vmem_capacity_bytes():
    try:
        return int(pltpu.get_tpu_info().vmem_capacity_bytes)
    except Exception:
        return 128 * 1024 * 1024  # v5e/v6e physical VMEM


def _choose_tiles(n128, e128, fi_pad, fo_pad, fb, budget):
    """Largest (tn, te) whose per-kernel VMEM footprint fits the budget."""
    cands = (1024, 512, 256, 128)
    for tn in cands:
        if tn > max(n128, 128):
            continue
        for te in cands:
            if te > max(e128, 128):
                continue
            e_p = _round_up(e128, te)
            # xtheta kernel: x (f32) + theta + out, double-buffered.
            k0 = 2 * tn * fi_pad * 4 + 2 * fi_pad * fo_pad * fb + 2 * tn * fo_pad * fb
            # edge-aggregation kernel: H^T tile, xtheta tile, scale, out, f32 acc.
            k1 = (2 * te * tn * fb + 2 * tn * fo_pad * fb + 2 * te * 4
                  + 2 * te * fo_pad * fb + te * fo_pad * 4)
            # node-update kernel: H tile, resident E_feat, dinv, bias, f32 out.
            k2 = (2 * tn * e_p * fb + 2 * e_p * fo_pad * fb
                  + 2 * tn * 4 + 2 * fo_pad * 4 + 2 * tn * fo_pad * 4)
            if max(k0, k1, k2) <= budget:
                return tn, te
    return 128, 128


# --------------------------------------------------------------------------
# Kernel 0: X_theta = X @ Theta   (feed-dtype output, node tiles "parallel")
# --------------------------------------------------------------------------
def _xtheta_kernel(x_ref, th_ref, o_ref):
    xt = jnp.dot(x_ref[...].astype(th_ref.dtype), th_ref[...],
                 preferred_element_type=jnp.float32)
    o_ref[...] = xt.astype(o_ref.dtype)


def _xtheta(x, theta, *, tn, feed, vmem_limit):
    n_pad, fi_pad = x.shape
    fo_pad = theta.shape[1]
    return pl.pallas_call(
        _xtheta_kernel,
        out_shape=jax.ShapeDtypeStruct((n_pad, fo_pad), feed),
        grid=(n_pad // tn,),
        in_specs=[
            pl.BlockSpec((tn, fi_pad), lambda i: (i, 0)),
            pl.BlockSpec((fi_pad, fo_pad), lambda i: (0, 0)),
        ],
        out_specs=pl.BlockSpec((tn, fo_pad), lambda i: (i, 0)),
        compiler_params=pltpu.CompilerParams(
            dimension_semantics=("parallel",),
            vmem_limit_bytes=vmem_limit),
    )(x, theta)


# --------------------------------------------------------------------------
# Kernel 1: edge aggregation  E_feat = diag(w/B) @ H^T @ X_theta
# Grid: (edge tiles "parallel", node tiles "arbitrary" reduction).
# Output block stays VMEM-resident per edge tile; f32 acc is only [te, Fo].
# --------------------------------------------------------------------------
def _edge_agg_kernel(ht_ref, xt_ref, scale_ref, e_ref, acc_ref):
    k = pl.program_id(1)

    @pl.when(k == 0)
    def _():
        acc_ref[...] = jnp.zeros_like(acc_ref)

    acc_ref[...] += jnp.dot(ht_ref[...], xt_ref[...],
                            preferred_element_type=jnp.float32)

    @pl.when(k == pl.num_programs(1) - 1)
    def _():
        # Hoisted per-edge scale (w_e / B_e) applied once; single cast to feed.
        e_ref[...] = (acc_ref[...] * scale_ref[...]).astype(e_ref.dtype)


def _edge_aggregate(ht, xtheta, scale, *, tn, te, feed, vmem_limit):
    e_pad, n_pad = ht.shape
    fo_pad = xtheta.shape[1]
    return pl.pallas_call(
        _edge_agg_kernel,
        out_shape=jax.ShapeDtypeStruct((e_pad, fo_pad), feed),
        grid=(e_pad // te, n_pad // tn),
        in_specs=[
            pl.BlockSpec((te, tn), lambda j, k: (j, k)),        # H^T tile
            pl.BlockSpec((tn, fo_pad), lambda j, k: (k, 0)),    # X@Theta tile
            pl.BlockSpec((te, 1), lambda j, k: (j, 0)),         # w/B tile
        ],
        out_specs=pl.BlockSpec((te, fo_pad), lambda j, k: (j, 0)),
        scratch_shapes=[pltpu.VMEM((te, fo_pad), jnp.float32)],
        compiler_params=pltpu.CompilerParams(
            dimension_semantics=("parallel", "arbitrary"),
            vmem_limit_bytes=vmem_limit),
    )(ht, xtheta, scale)


# --------------------------------------------------------------------------
# Kernel 2: node update  X_out = normalize(diag(1/D) @ H @ E_feat + b)
# Grid: independent node tiles ("parallel" -> both TensorCores on v7x).
# --------------------------------------------------------------------------
def _node_update_kernel(h_ref, e_ref, dinv_ref, bias_ref, o_ref):
    node = jnp.dot(h_ref[...], e_ref[...],
                   preferred_element_type=jnp.float32)            # [tn, Fo]
    node = node * dinv_ref[...] + bias_ref[...]
    # F.normalize(p=2, eps=1e-12): rsqrt on the EUP slot (clamp on squared norm).
    sumsq = jnp.sum(node * node, axis=-1, keepdims=True)
    o_ref[...] = node * jax.lax.rsqrt(jnp.maximum(sumsq, 1e-24))


def _node_update(h, e_feat, d_inv, bias, *, tn, vmem_limit):
    n_pad, e_pad = h.shape
    fo_pad = e_feat.shape[1]
    return pl.pallas_call(
        _node_update_kernel,
        out_shape=jax.ShapeDtypeStruct((n_pad, fo_pad), jnp.float32),
        grid=(n_pad // tn,),
        in_specs=[
            pl.BlockSpec((tn, e_pad), lambda i: (i, 0)),        # H node-tile
            pl.BlockSpec((e_pad, fo_pad), lambda i: (0, 0)),    # E_feat (resident)
            pl.BlockSpec((tn, 1), lambda i: (i, 0)),            # 1/D node-tile
            pl.BlockSpec((1, fo_pad), lambda i: (0, 0)),        # bias (resident)
        ],
        out_specs=pl.BlockSpec((tn, fo_pad), lambda i: (i, 0)),
        compiler_params=pltpu.CompilerParams(
            dimension_semantics=("parallel",),
            vmem_limit_bytes=vmem_limit),
    )(h, e_feat, d_inv, bias)


# --------------------------------------------------------------------------
# Parameters (glorot-uniform Theta [Fi, Fo] + zero bias), matching the module's
# layer dims: (num_layers-1) x (input_dim -> hidden_dim), then hidden -> output.
# --------------------------------------------------------------------------
def init_hypergcn_params(key, input_dim, output_dim, num_layers=1, hidden_dim=None):
    hidden_dim = input_dim if hidden_dim is None else hidden_dim
    dims = [(input_dim, hidden_dim)] * (num_layers - 1) + [(hidden_dim, output_dim)]
    params = []
    for fi, fo in dims:
        key, sub = jax.random.split(key)
        limit = (6.0 / (fi + fo)) ** 0.5
        theta = jax.random.uniform(sub, (fi, fo), jnp.float32, -limit, limit)
        bias = jnp.zeros((1, fo), jnp.float32)
        params.append((theta, bias))
    return params


@functools.partial(jax.jit, static_argnames=("num_nodes", "num_edges",
                                             "return_all_layer"))
def hypergcn_forward(x, hyperedge_index, hyperedge_weight, params,
                     num_nodes, num_edges, return_all_layer=False):
    feed = _feed_dtype()
    fb = jnp.dtype(feed).itemsize

    n128 = _round_up(num_nodes, 128)
    e128 = _round_up(num_edges, 128)

    fi0 = x.shape[1]
    fi_pad_max = max(_round_up(theta.shape[0], 128) for theta, _ in params)
    fi_pad_max = max(fi_pad_max, _round_up(fi0, 128))
    fo_pad_max = max(_round_up(theta.shape[1], 128) for theta, _ in params)

    cap = _vmem_capacity_bytes()
    tn, te = _choose_tiles(n128, e128, fi_pad_max, fo_pad_max, fb,
                           budget=int(cap * 0.7))
    vmem_limit = int(cap * 0.85)

    n_pad = _round_up(n128, tn)
    e_pad = _round_up(e128, te)

    # ---- glue (plain JAX): computed once, shared by all layers ------------
    # TODO(synk): for large sparse graphs, replace dense H with a
    # scalar-prefetch / DMA-gather SpMM so memory scales with nnz, not N*E.
    h_dense = jnp.zeros((n_pad, e_pad), jnp.float32).at[
        hyperedge_index[0], hyperedge_index[1]].add(1.0)
    if hyperedge_weight is None:
        w_row = jnp.zeros((1, e_pad), jnp.float32).at[0, :num_edges].set(1.0)
    else:
        w_row = jnp.zeros((1, e_pad), jnp.float32).at[0, :num_edges].set(
            hyperedge_weight.astype(jnp.float32))

    deg_e = jnp.sum(h_dense, axis=0, keepdims=True)                  # B_e  [1, E]
    scale = jnp.where(deg_e > 0.0, w_row / deg_e, 0.0).reshape(e_pad, 1)
    deg_v = jnp.dot(h_dense, w_row.reshape(e_pad, 1))                # D_v  [N, 1]
    d_inv = jnp.where(deg_v > 0.0, 1.0 / deg_v, 0.0)

    # 0/1/count incidence entries are exact in bf16 for counts <= 256.
    h_feed = h_dense.astype(feed)
    ht_feed = h_feed.T

    # Pad node features to lane-dense width; keep the padded slab through layers.
    fi0_pad = _round_up(fi0, 128)
    cur = jnp.zeros((n_pad, fi0_pad), jnp.float32).at[:num_nodes, :fi0].set(
        x.astype(jnp.float32))

    embeddings = []
    for theta, bias in params:
        fi, fo = theta.shape
        fi_pad = _round_up(fi, 128)
        fo_pad = _round_up(fo, 128)
        theta_p = jnp.zeros((fi_pad, fo_pad), jnp.float32).at[:fi, :fo].set(
            theta.astype(jnp.float32)).astype(feed)
        bias_p = jnp.zeros((1, fo_pad), jnp.float32).at[:, :fo].set(
            bias.astype(jnp.float32).reshape(1, fo))

        xtheta = _xtheta(cur, theta_p, tn=tn, feed=feed, vmem_limit=vmem_limit)
        e_feat = _edge_aggregate(ht_feed, xtheta, scale,
                                 tn=tn, te=te, feed=feed, vmem_limit=vmem_limit)
        cur = _node_update(h_feed, e_feat, d_inv, bias_p,
                           tn=tn, vmem_limit=vmem_limit)
        embeddings.append(cur[:num_nodes, :fo])

    if return_all_layer:
        return embeddings
    return [embeddings[-1]]


# --------------------------------------------------------------------------
# Plain-JAX reference (unpadded, f32) for a correctness check.
# --------------------------------------------------------------------------
def _reference(x, hyperedge_index, hyperedge_weight, params, num_nodes, num_edges):
    h = jnp.zeros((num_nodes, num_edges), jnp.float32).at[
        hyperedge_index[0], hyperedge_index[1]].add(1.0)
    w = hyperedge_weight.astype(jnp.float32)
    deg_e = h.sum(0)
    b_inv = jnp.where(deg_e > 0, 1.0 / deg_e, 0.0)
    deg_v = h @ w
    d_inv = jnp.where(deg_v > 0, 1.0 / deg_v, 0.0)
    cur = x.astype(jnp.float32)
    out = None
    for theta, bias in params:
        xt = cur @ theta
        e_feat = (w * b_inv)[:, None] * (h.T @ xt)
        node = d_inv[:, None] * (h @ e_feat) + bias
        nrm = jnp.sqrt(jnp.sum(node * node, axis=-1, keepdims=True))
        cur = node / jnp.maximum(nrm, 1e-12)
        out = cur
    return out


if __name__ == "__main__":
    key = jax.random.PRNGKey(0)

    num_nodes = 64
    num_edges = 32
    nodes_per_edge = 4
    input_dim = 32
    hidden_dim = 32
    output_dim = 32
    num_layers = 2

    k_x, k_idx, k_w, k_p = jax.random.split(key, 4)

    x = jax.random.normal(k_x, (num_nodes, input_dim), jnp.float32)

    nnz = num_edges * nodes_per_edge
    node_idx = jax.random.randint(k_idx, (nnz,), 0, num_nodes, jnp.int32)
    edge_idx = jnp.repeat(jnp.arange(num_edges, dtype=jnp.int32), nodes_per_edge)
    hyperedge_index = jnp.stack([node_idx, edge_idx], axis=0)

    hyperedge_weight = jax.random.uniform(k_w, (num_edges,), jnp.float32, 0.5, 1.5)

    params = init_hypergcn_params(k_p, input_dim, output_dim,
                                  num_layers=num_layers, hidden_dim=hidden_dim)

    out = hypergcn_forward(x, hyperedge_index, hyperedge_weight, params,
                           num_nodes=num_nodes, num_edges=num_edges)
    result = jax.block_until_ready(out[-1])

    ref = _reference(x, hyperedge_index, hyperedge_weight, params,
                     num_nodes, num_edges)

    assert result.shape == (num_nodes, output_dim)
    assert result.dtype == jnp.float32
    assert bool(jnp.all(jnp.isfinite(result)))
    # bf16 MXU feeds with f32 accumulation on TPU -> small deviation vs f32 ref.
    assert bool(jnp.max(jnp.abs(result - ref)) < 5e-2)
    print("KERNEL_OK")
</pallas_src>

<mosaic_0001>
module attributes {stable_mosaic.version = 11 : i64} {
  func.func @_edge_agg_kernel(%arg0: i32, %arg1: i32, %arg2: memref<128x128xf32, #tpu.memory_space<vmem>>, %arg3: memref<128x128xf32, #tpu.memory_space<vmem>>, %arg4: memref<128x1xf32, #tpu.memory_space<vmem>>, %arg5: memref<128x128xf32, #tpu.memory_space<vmem>>, %arg6: memref<128x128xf32, #tpu.memory_space<vmem>>) attributes {dimension_semantics = [#tpu.dimension_semantics<parallel>, #tpu.dimension_semantics<arbitrary>], iteration_bounds = array<i64: 1, 1>, scalar_prefetch = 0 : i64, scratch_operands = 1 : i64, tpu.core_type = #tpu.core_type<tc>, window_params = [{transform_indices = @transform_0, window_bounds = array<i64: 128, 128>}, {transform_indices = @transform_1, window_bounds = array<i64: 128, 128>}, {transform_indices = @transform_2, window_bounds = array<i64: 128, 1>}, {transform_indices = @transform_3, window_bounds = array<i64: 128, 128>}]} {
    %c0_i32 = arith.constant 0 : i32
    %0 = arith.cmpi eq, %arg1, %c0_i32 : i32
    %1 = arith.extui %0 : i1 to i32
    %c0_i32_0 = arith.constant 0 : i32
    %2 = arith.cmpi ne, %1, %c0_i32_0 : i32
    scf.if %2 {
      %cst_10 = arith.constant 0.000000e+00 : f32
      %12 = vector.broadcast %cst_10 : f32 to vector<128x128xf32>
      %c0_11 = arith.constant 0 : index
      %c0_12 = arith.constant 0 : index
      %13 = vector.load %arg6[%c0_11, %c0_12] : memref<128x128xf32, #tpu.memory_space<vmem>>, vector<128x128xf32>
      tpu.vector_store %arg6[%c0_11, %c0_12], %12 {strides = array<i32>} : memref<128x128xf32, #tpu.memory_space<vmem>>, vector<128x128xf32>,
    } else {
    }
    %c0 = arith.constant 0 : index
    %c0_1 = arith.constant 0 : index
    %3 = vector.load %arg6[%c0, %c0_1] : memref<128x128xf32, #tpu.memory_space<vmem>>, vector<128x128xf32>
    %c0_2 = arith.constant 0 : index
    %c0_3 = arith.constant 0 : index
    %4 = vector.load %arg2[%c0_2, %c0_3] : memref<128x128xf32, #tpu.memory_space<vmem>>, vector<128x128xf32>
    %c0_4 = arith.constant 0 : index
    %c0_5 = arith.constant 0 : index
    %5 = vector.load %arg3[%c0_4, %c0_5] : memref<128x128xf32, #tpu.memory_space<vmem>>, vector<128x128xf32>
    %cst = arith.constant dense<0.000000e+00> : vector<128x128xf32>
    %6 = tpu.matmul %4, %5, %cst {dimension_numbers = #tpu.dot_dimension_numbers<[1], [0], [0], [1], [0, 0, 1, 1], [], []>} : vector<128x128xf32>, vector<128x128xf32>, vector<128x128xf32> -> vector<128x128xf32>
    %7 = arith.addf %3, %6 : vector<128x128xf32>
    %c0_6 = arith.constant 0 : index
    %c0_7 = arith.constant 0 : index
    %8 = vector.load %arg6[%c0_6, %c0_7] : memref<128x128xf32, #tpu.memory_space<vmem>>, vector<128x128xf32>
    tpu.vector_store %arg6[%c0_6, %c0_7], %7 {strides = array<i32>} : memref<128x128xf32, #tpu.memory_space<vmem>>, vector<128x128xf32>,
    %c0_i32_8 = arith.constant 0 : i32
    %9 = arith.cmpi eq, %arg1, %c0_i32_8 : i32
    %10 = arith.extui %9 : i1 to i32
    %c0_i32_9 = arith.constant 0 : i32
    %11 = arith.cmpi ne, %10, %c0_i32_9 : i32
    scf.if %11 {
      %c0_10 = arith.constant 0 : index
      %c0_11 = arith.constant 0 : index
      %12 = vector.load %arg6[%c0_10, %c0_11] : memref<128x128xf32, #tpu.memory_space<vmem>>, vector<128x128xf32>
      %c0_12 = arith.constant 0 : index
      %c0_13 = arith.constant 0 : index
      %13 = vector.load %arg4[%c0_12, %c0_13] : memref<128x1xf32, #tpu.memory_space<vmem>>, vector<128x1xf32>
      %14 = vector.broadcast %13 : vector<128x1xf32> to vector<128x128xf32>
      %15 = arith.mulf %12, %14 : vector<128x128xf32>
      %c0_14 = arith.constant 0 : index
      %c0_15 = arith.constant 0 : index
      %16 = vector.load %arg5[%c0_14, %c0_15] : memref<128x128xf32, #tpu.memory_space<vmem>>, vector<128x128xf32>
      tpu.vector_store %arg5[%c0_14, %c0_15], %15 {strides = array<i32>} : memref<128x128xf32, #tpu.memory_space<vmem>>, vector<128x128xf32>,
    } else {
    }
    return
  }
  func.func @transform_0(%arg0: i32, %arg1: i32) -> (i32, i32) {
    %c0_i32 = arith.constant 0 : i32
    return %arg0, %arg1 : i32, i32
  }
  func.func @transform_1(%arg0: i32, %arg1: i32) -> (i32, i32) {
    %c0_i32 = arith.constant 0 : i32
    %c0_i32_0 = arith.constant 0 : i32
    return %arg1, %c0_i32 : i32, i32
  }
  func.func @transform_2(%arg0: i32, %arg1: i32) -> (i32, i32) {
    %c0_i32 = arith.constant 0 : i32
    %c0_i32_0 = arith.constant 0 : i32
    return %arg0, %c0_i32 : i32, i32
  }
  func.func @transform_3(%arg0: i32, %arg1: i32) -> (i32, i32) {
    %c0_i32 = arith.constant 0 : i32
    %c0_i32_0 = arith.constant 0 : i32
    return %arg0, %c0_i32 : i32, i32
  }
}

module attributes {stable_mosaic.version = 11 : i64} {
  func.func @_xtheta_kernel(%arg0: i32, %arg1: memref<128x128xf32, #tpu.memory_space<vmem>>, %arg2: memref<128x128xf32, #tpu.memory_space<vmem>>, %arg3: memref<128x128xf32, #tpu.memory_space<vmem>>) attributes {dimension_semantics = [#tpu.dimension_semantics<parallel>], iteration_bounds = array<i64: 1>, scalar_prefetch = 0 : i64, scratch_operands = 0 : i64, tpu.core_type = #tpu.core_type<tc>, window_params = [{transform_indices = @transform_0, window_bounds = array<i64: 128, 128>}, {pipeline_mode = #tpu.pipeline_mode<synchronous>, transform_indices = @transform_1, window_bounds = array<i64: 128, 128>}, {transform_indices = @transform_2, window_bounds = array<i64: 128, 128>}]} {
    %c0 = arith.constant 0 : index
    %c0_0 = arith.constant 0 : index
    %0 = vector.load %arg1[%c0, %c0_0] : memref<128x128xf32, #tpu.memory_space<vmem>>, vector<128x128xf32>
    %c0_1 = arith.constant 0 : index
    %c0_2 = arith.constant 0 : index
    %1 = vector.load %arg2[%c0_1, %c0_2] : memref<128x128xf32, #tpu.memory_space<vmem>>, vector<128x128xf32>
    %cst = arith.constant dense<0.000000e+00> : vector<128x128xf32>
    %2 = tpu.matmul %0, %1, %cst {dimension_numbers = #tpu.dot_dimension_numbers<[1], [0], [0], [1], [0, 0, 1, 1], [], []>} : vector<128x128xf32>, vector<128x128xf32>, vector<128x128xf32> -> vector<128x128xf32>
    %c0_3 = arith.constant 0 : index
    %c0_4 = arith.constant 0 : index
    %3 = vector.load %arg3[%c0_3, %c0_4] : memref<128x128xf32, #tpu.memory_space<vmem>>, vector<128x128xf32>
    tpu.vector_store %arg3[%c0_3, %c0_4], %2 {strides = array<i32>} : memref<128x128xf32, #tpu.memory_space<vmem>>, vector<128x128xf32>,
    return
  }
  func.func @transform_0(%arg0: i32) -> (i32, i32) {
    %c0_i32 = arith.constant 0 : i32
    %c0_i32_0 = arith.constant 0 : i32
    return %arg0, %c0_i32 : i32, i32
  }
  func.func @transform_1(%arg0: i32) -> (i32, i32) {
    %c0_i32 = arith.constant 0 : i32
    %c0_i32_0 = arith.constant 0 : i32
    %c0_i32_1 = arith.constant 0 : i32
    return %c0_i32, %c0_i32_0 : i32, i32
  }
  func.func @transform_2(%arg0: i32) -> (i32, i32) {
    %c0_i32 = arith.constant 0 : i32
    %c0_i32_0 = arith.constant 0 : i32
    return %arg0, %c0_i32 : i32, i32
  }
}

module attributes {stable_mosaic.version = 11 : i64} {
  func.func @_node_update_kernel(%arg0: i32, %arg1: memref<128x128xf32, #tpu.memory_space<vmem>>, %arg2: memref<128x128xf32, #tpu.memory_space<vmem>>, %arg3: memref<128x1xf32, #tpu.memory_space<vmem>>, %arg4: memref<1x128xf32, #tpu.memory_space<vmem>>, %arg5: memref<128x128xf32, #tpu.memory_space<vmem>>) attributes {dimension_semantics = [#tpu.dimension_semantics<parallel>], iteration_bounds = array<i64: 1>, scalar_prefetch = 0 : i64, scratch_operands = 0 : i64, tpu.core_type = #tpu.core_type<tc>, window_params = [{transform_indices = @transform_0, window_bounds = array<i64: 128, 128>}, {pipeline_mode = #tpu.pipeline_mode<synchronous>, transform_indices = @transform_1, window_bounds = array<i64: 128, 128>}, {transform_indices = @transform_2, window_bounds = array<i64: 128, 1>}, {pipeline_mode = #tpu.pipeline_mode<synchronous>, transform_indices = @transform_3, window_bounds = array<i64: 1, 128>}, {transform_indices = @transform_4, window_bounds = array<i64: 128, 128>}]} {
    %c0 = arith.constant 0 : index
    %c0_0 = arith.constant 0 : index
    %0 = vector.load %arg1[%c0, %c0_0] : memref<128x128xf32, #tpu.memory_space<vmem>>, vector<128x128xf32>
    %c0_1 = arith.constant 0 : index
    %c0_2 = arith.constant 0 : index
    %1 = vector.load %arg2[%c0_1, %c0_2] : memref<128x128xf32, #tpu.memory_space<vmem>>, vector<128x128xf32>
    %cst = arith.constant dense<0.000000e+00> : vector<128x128xf32>
    %2 = tpu.matmul %0, %1, %cst {dimension_numbers = #tpu.dot_dimension_numbers<[1], [0], [0], [1], [0, 0, 1, 1], [], []>} : vector<128x128xf32>, vector<128x128xf32>, vector<128x128xf32> -> vector<128x128xf32>
    %c0_3 = arith.constant 0 : index
    %c0_4 = arith.constant 0 : index
    %3 = vector.load %arg3[%c0_3, %c0_4] : memref<128x1xf32, #tpu.memory_space<vmem>>, vector<128x1xf32>
    %4 = vector.broadcast %3 : vector<128x1xf32> to vector<128x128xf32>
    %5 = arith.mulf %2, %4 : vector<128x128xf32>
    %c0_5 = arith.constant 0 : index
    %c0_6 = arith.constant 0 : index
    %6 = vector.load %arg4[%c0_5, %c0_6] : memref<1x128xf32, #tpu.memory_space<vmem>>, vector<1x128xf32>
    %7 = vector.broadcast %6 : vector<1x128xf32> to vector<128x128xf32>
    %8 = arith.addf %5, %7 : vector<128x128xf32>
    %9 = arith.mulf %8, %8 : vector<128x128xf32>
    %cst_7 = arith.constant dense<0.000000e+00> : vector<128xf32>
    %10 = vector.multi_reduction <add>, %9, %cst_7 [1] : vector<128x128xf32> to vector<128xf32>
    %11 = vector.shape_cast %10 : vector<128xf32> to vector<128x1xf32>
    %cst_8 = arith.constant 1.000000e-24 : f32
    %12 = vector.broadcast %cst_8 : f32 to vector<128x1xf32>
    %13 = arith.maximumf %11, %12 : vector<128x1xf32>
    %14 = math.rsqrt %13 : vector<128x1xf32>
    %15 = vector.broadcast %14 : vector<128x1xf32> to vector<128x128xf32>
    %16 = arith.mulf %8, %15 : vector<128x128xf32>
    %c0_9 = arith.constant 0 : index
    %c0_10 = arith.constant 0 : index
    %17 = vector.load %arg5[%c0_9, %c0_10] : memref<128x128xf32, #tpu.memory_space<vmem>>, vector<128x128xf32>
    tpu.vector_store %arg5[%c0_9, %c0_10], %16 {strides = array<i32>} : memref<128x128xf32, #tpu.memory_space<vmem>>, vector<128x128xf32>,
    return
  }
  func.func @transform_0(%arg0: i32) -> (i32, i32) {
    %c0_i32 = arith.constant 0 : i32
    %c0_i32_0 = arith.constant 0 : i32
    return %arg0, %c0_i32 : i32, i32
  }
  func.func @transform_1(%arg0: i32) -> (i32, i32) {
    %c0_i32 = arith.constant 0 : i32
    %c0_i32_0 = arith.constant 0 : i32
    %c0_i32_1 = arith.constant 0 : i32
    return %c0_i32, %c0_i32_0 : i32, i32
  }
  func.func @transform_2(%arg0: i32) -> (i32, i32) {
    %c0_i32 = arith.constant 0 : i32
    %c0_i32_0 = arith.constant 0 : i32
    return %arg0, %c0_i32 : i32, i32
  }
  func.func @transform_3(%arg0: i32) -> (i32, i32) {
    %c0_i32 = arith.constant 0 : i32
    %c0_i32_0 = arith.constant 0 : i32
    %c0_i32_1 = arith.constant 0 : i32
    return %c0_i32, %c0_i32_0 : i32, i32
  }
  func.func @transform_4(%arg0: i32) -> (i32, i32) {
    %c0_i32 = arith.constant 0 : i32
    %c0_i32_0 = arith.constant 0 : i32
    return %arg0, %c0_i32 : i32, i32
  }
}

</mosaic_0001>

<llo_original>
// kernel: hypergcn_forward.6
$region0: #{hypergcn_forward.6}
  #allocation0 [shape = 'u32[]', space=smem, size = 0x4, offset = 0x4, fixed_abs, tag = 'smem constant byte address 0x4 - core index']
  #allocation1 [shape = 'u32[72,128]{1,0:T(1,128)}', space=vmem, size = 0x9000, scoped, tag = 'internal scratch']
  %s0 = inlined_call_operand.vmem [shape: f32[128,128], index: 0, kind: input, shape index: {}]
  %s1 = inlined_call_operand.vmem [shape: f32[128,128], index: 1, kind: input, shape index: {}]
  %s2 = inlined_call_operand.vmem [shape: f32[128,128], index: 2, kind: output, shape index: {}]
  %s3 = sld [smem:[#allocation0]]
  $region18: #{hypergcn_forward.6} parent=0
    _
  %s5 = ssub.s32 1, %s3
  %s6 = scalar_select 0, %s5, %s3
  // Predicated region
  $region2: #{hypergcn_forward.6} parent=0 // pred_check
    _
  $region3: #{hypergcn_forward.6} parent=0 // pred_check_branch
    %8 = sbr.rel (0) target = $region5
  $region4: #{hypergcn_forward.6} parent=0 // pred_region
    _
  $region5: #{hypergcn_forward.6} parent=0 // pred_fallthru
    _
  // Predicated region
  $region6: #{hypergcn_forward.6} parent=0 // pred_check
    _
  $region7: #{hypergcn_forward.6} parent=0 // pred_check_branch
    %10 = sbr.rel (0) target = $region9
  $region8: #{hypergcn_forward.6} parent=0 // pred_region
    _
  $region9: #{hypergcn_forward.6} parent=0 // pred_fallthru
    _
  %v11 = vld [vmem:[%s0] sm:$0xff]
  %v12 = vld [vmem:[%s0 + $0x8] sm:$0xff]
  %v13 = vld [vmem:[%s0 + $0x10] sm:$0xff]
  %v14 = vld [vmem:[%s0 + $0x18] sm:$0xff]
  %v15 = vld [vmem:[%s0 + $0x20] sm:$0xff]
  %v16 = vld [vmem:[%s0 + $0x28] sm:$0xff]
  %v17 = vld [vmem:[%s0 + $0x30] sm:$0xff]
  %v18 = vld [vmem:[%s0 + $0x38] sm:$0xff]
  %v19 = vld [vmem:[%s0 + $0x40] sm:$0xff]
  %v20 = vld [vmem:[%s0 + $0x48] sm:$0xff]
  %v21 = vld [vmem:[%s0 + $0x50] sm:$0xff]
  %v22 = vld [vmem:[%s0 + $0x58] sm:$0xff]
  %v23 = vld [vmem:[%s0 + $0x60] sm:$0xff]
  %v24 = vld [vmem:[%s0 + $0x68] sm:$0xff]
  %v25 = vld [vmem:[%s0 + $0x70] sm:$0xff]
  %v26 = vld [vmem:[%s0 + $0x78] sm:$0xff]
  %v27 = vld [vmem:[%s1] sm:$0xff]
  %v28 = vld [vmem:[%s1 + $0x8] sm:$0xff]
  %v29 = vld [vmem:[%s1 + $0x10] sm:$0xff]
  %v30 = vld [vmem:[%s1 + $0x18] sm:$0xff]
  %v31 = vld [vmem:[%s1 + $0x20] sm:$0xff]
  %v32 = vld [vmem:[%s1 + $0x28] sm:$0xff]
  %v33 = vld [vmem:[%s1 + $0x30] sm:$0xff]
  %v34 = vld [vmem:[%s1 + $0x38] sm:$0xff]
  %v35 = vld [vmem:[%s1 + $0x40] sm:$0xff]
  %v36 = vld [vmem:[%s1 + $0x48] sm:$0xff]
  %v37 = vld [vmem:[%s1 + $0x50] sm:$0xff]
  %v38 = vld [vmem:[%s1 + $0x58] sm:$0xff]
  %v39 = vld [vmem:[%s1 + $0x60] sm:$0xff]
  %v40 = vld [vmem:[%s1 + $0x68] sm:$0xff]
  %v41 = vld [vmem:[%s1 + $0x70] sm:$0xff]
  %v42 = vld [vmem:[%s1 + $0x78] sm:$0xff]
  %43 = vmatpush.msra.mxu0 %v42
  %44 = vmatpush.msra.mxu0 %v41
  %45 = vmatpush.msra.mxu0 %v40
  %46 = vmatpush.msra.mxu0 %v39
  %47 = vmatpush.msra.mxu0 %v38
  %48 = vmatpush.msra.mxu0 %v37
  %49 = vmatpush.msra.mxu0 %v36
  %50 = vmatpush.msra.mxu0 %v35
  %51 = vmatpush.msra.mxu0 %v34
  %52 = vmatpush.msra.mxu0 %v33
  %53 = vmatpush.msra.mxu0 %v32
  %54 = vmatpush.msra.mxu0 %v31
  %55 = vmatpush.msra.mxu0 %v30
  %56 = vmatpush.msra.mxu0 %v29
  %57 = vmatpush.msra.mxu0 %v28
  %58 = vmatpush.msra.mxu0 %v27
  %59 = vmatmul.f32.gmra.mxu0 %v11
  %v60 = vpop.f32.mrf.mxu0
  %v61 = vadd.f32 0.0, %v60
  %62 = vmatmul.f32.gmra.mxu0 %v12
  %v63 = vpop.f32.mrf.mxu0
  %v64 = vadd.f32 0.0, %v63
  %65 = vmatmul.f32.gmra.mxu0 %v13
  %v66 = vpop.f32.mrf.mxu0
  %v67 = vadd.f32 0.0, %v66
  %68 = vmatmul.f32.gmra.mxu0 %v14
  %v69 = vpop.f32.mrf.mxu0
  %v70 = vadd.f32 0.0, %v69
  %71 = vmatmul.f32.gmra.mxu0 %v15
  %v72 = vpop.f32.mrf.mxu0
  %v73 = vadd.f32 0.0, %v72
  %74 = vmatmul.f32.gmra.mxu0 %v16
  %v75 = vpop.f32.mrf.mxu0
  %v76 = vadd.f32 0.0, %v75
  %77 = vmatmul.f32.gmra.mxu0 %v17
  %v78 = vpop.f32.mrf.mxu0
  %v79 = vadd.f32 0.0, %v78
  %80 = vmatmul.f32.gmra.mxu0 %v18
  %v81 = vpop.f32.mrf.mxu0
  %v82 = vadd.f32 0.0, %v81
  %83 = vmatmul.f32.gmra.mxu0 %v19
  %v84 = vpop.f32.mrf.mxu0
  %v85 = vadd.f32 0.0, %v84
  %86 = vmatmul.f32.gmra.mxu0 %v20
  %v87 = vpop.f32.mrf.mxu0
  %v88 = vadd.f32 0.0, %v87
  %89 = vmatmul.f32.gmra.mxu0 %v21
  %v90 = vpop.f32.mrf.mxu0
  %v91 = vadd.f32 0.0, %v90
  %92 = vmatmul.f32.gmra.mxu0 %v22
  %v93 = vpop.f32.mrf.mxu0
  %v94 = vadd.f32 0.0, %v93
  %95 = vmatmul.f32.gmra.mxu0 %v23
  %v96 = vpop.f32.mrf.mxu0
  %v97 = vadd.f32 0.0, %v96
  %98 = vmatmul.f32.gmra.mxu0 %v24
  %v99 = vpop.f32.mrf.mxu0
  %v100 = vadd.f32 0.0, %v99
  %101 = vmatmul.f32.gmra.mxu0 %v25
  %v102 = vpop.f32.mrf.mxu0
  %v103 = vadd.f32 0.0, %v102
  %104 = vmatmul.f32.gmra.mxu0 %v26
  %v105 = vpop.f32.mrf.mxu0
  %v106 = vadd.f32 0.0, %v105
  %107 = vdwg.mxu0
  %108 = vst [vmem:[%s2] sm:$0xff] %v61
  %109 = vst [vmem:[%s2 + $0x8] sm:$0xff] %v64
  %110 = vst [vmem:[%s2 + $0x10] sm:$0xff] %v67
  %111 = vst [vmem:[%s2 + $0x18] sm:$0xff] %v70
  %112 = vst [vmem:[%s2 + $0x20] sm:$0xff] %v73
  %113 = vst [vmem:[%s2 + $0x28] sm:$0xff] %v76
  %114 = vst [vmem:[%s2 + $0x30] sm:$0xff] %v79
  %115 = vst [vmem:[%s2 + $0x38] sm:$0xff] %v82
  %116 = vst [vmem:[%s2 + $0x40] sm:$0xff] %v85
  %117 = vst [vmem:[%s2 + $0x48] sm:$0xff] %v88
  %118 = vst [vmem:[%s2 + $0x50] sm:$0xff] %v91
  %119 = vst [vmem:[%s2 + $0x58] sm:$0xff] %v94
  %120 = vst [vmem:[%s2 + $0x60] sm:$0xff] %v97
  %121 = vst [vmem:[%s2 + $0x68] sm:$0xff] %v100
  %122 = vst [vmem:[%s2 + $0x70] sm:$0xff] %v103
  %123 = vst [vmem:[%s2 + $0x78] sm:$0xff] %v106
  // Predicated region
  $region10: #{hypergcn_forward.6} parent=0 // pred_check
    _
  $region11: #{hypergcn_forward.6} parent=0 // pred_check_branch
    %125 = sbr.rel (0) target = $region13
  $region12: #{hypergcn_forward.6} parent=0 // pred_region
    _
  $region13: #{hypergcn_forward.6} parent=0 // pred_fallthru
    _
  // Predicated region
  $region14: #{hypergcn_forward.6} parent=0 // pred_check
    _
  $region15: #{hypergcn_forward.6} parent=0 // pred_check_branch
    %127 = sbr.rel (0) target = $region17
  $region16: #{hypergcn_forward.6} parent=0 // pred_region
    _
  $region17: #{hypergcn_forward.6} parent=0 // pred_fallthru
    _

// kernel: hypergcn_forward.7
$region0: #{hypergcn_forward.7}
  #allocation0 [shape = 'u32[]', space=smem, size = 0x4, offset = 0x4, fixed_abs, tag = 'smem constant byte address 0x4 - core index']
  #allocation1 [shape = 'u32[72,128]{1,0:T(1,128)}', space=vmem, size = 0x9000, scoped, tag = 'internal scratch']
  #allocation2 [shape = 'f32[128,128]{1,0:T(8,128)}', space=vmem, size = 0x10000, scoped, tag = 'scratch operand']
  %s0 = inlined_call_operand.vmem [shape: f32[128,128], index: 0, kind: input, shape index: {}]
  %s1 = inlined_call_operand.vmem [shape: f32[128,128], index: 1, kind: input, shape index: {}]
  %s2 = inlined_call_operand.vmem [shape: f32[128,1], index: 2, kind: input, shape index: {}]
  %s3 = inlined_call_operand.vmem [shape: f32[128,128], index: 3, kind: output, shape index: {}]
  %s4 = sld [smem:[#allocation0]]
  $region30: #{hypergcn_forward.7} parent=0
    _
  %s6 = ssub.s32 1, %s4
  %s7 = scalar_select 0, %s6, %s4
  // Predicated region
  $region2: #{hypergcn_forward.7} parent=0 // pred_check
    _
  $region3: #{hypergcn_forward.7} parent=0 // pred_check_branch
    %9 = sbr.rel (0) target = $region5
  $region4: #{hypergcn_forward.7} parent=0 // pred_region
    _
  $region5: #{hypergcn_forward.7} parent=0 // pred_fallthru
    _
  // Predicated region
  $region6: #{hypergcn_forward.7} parent=0 // pred_check
    _
  $region7: #{hypergcn_forward.7} parent=0 // pred_check_branch
    %11 = sbr.rel (0) target = $region9
  $region8: #{hypergcn_forward.7} parent=0 // pred_region
    _
  $region9: #{hypergcn_forward.7} parent=0 // pred_fallthru
    _
  // Predicated region
  $region10: #{hypergcn_forward.7} parent=0 // pred_check
    _
  $region11: #{hypergcn_forward.7} parent=0 // pred_check_branch
    %13 = sbr.rel (0) target = $region13
  $region12: #{hypergcn_forward.7} parent=0 // pred_region
    _
  $region13: #{hypergcn_forward.7} parent=0 // pred_fallthru
    _
  %p14 = scmp.eq.s32.totalorder 0, 0
  // Predicated region
  $region14: #{hypergcn_forward.7} parent=0 // pred_check
    %p15 = pneg %p14
  $region15: #{hypergcn_forward.7} parent=0 // pred_check_branch
    %17 = sbr.rel (%p15) target = $region17
  $region16: #{hypergcn_forward.7} parent=0 // pred_region
    %18 = vst [vmem:[#allocation2] sm:$0xff] 0.0
    %19 = vst [vmem:[#allocation2 + $0x8] sm:$0xff] 0.0
    %20 = vst [vmem:[#allocation2 + $0x10] sm:$0xff] 0.0
    %21 = vst [vmem:[#allocation2 + $0x18] sm:$0xff] 0.0
    %22 = vst [vmem:[#allocation2 + $0x20] sm:$0xff] 0.0
    %23 = vst [vmem:[#allocation2 + $0x28] sm:$0xff] 0.0
    %24 = vst [vmem:[#allocation2 + $0x30] sm:$0xff] 0.0
    %25 = vst [vmem:[#allocation2 + $0x38] sm:$0xff] 0.0
    %26 = vst [vmem:[#allocation2 + $0x40] sm:$0xff] 0.0
    %27 = vst [vmem:[#allocation2 + $0x48] sm:$0xff] 0.0
    %28 = vst [vmem:[#allocation2 + $0x50] sm:$0xff] 0.0
    %29 = vst [vmem:[#allocation2 + $0x58] sm:$0xff] 0.0
    %30 = vst [vmem:[#allocation2 + $0x60] sm:$0xff] 0.0
    %31 = vst [vmem:[#allocation2 + $0x68] sm:$0xff] 0.0
    %32 = vst [vmem:[#allocation2 + $0x70] sm:$0xff] 0.0
    %33 = vst [vmem:[#allocation2 + $0x78] sm:$0xff] 0.0
  $region17: #{hypergcn_forward.7} parent=0 // pred_fallthru
    _
  %v34 = vld [vmem:[#allocation2] sm:$0xff]
  %v35 = vld [vmem:[#allocation2 + $0x8] sm:$0xff]
  %v36 = vld [vmem:[#allocation2 + $0x10] sm:$0xff]
  %v37 = vld [vmem:[#allocation2 + $0x18] sm:$0xff]
  %v38 = vld [vmem:[#allocation2 + $0x20] sm:$0xff]
  %v39 = vld [vmem:[#allocation2 + $0x28] sm:$0xff]
  %v40 = vld [vmem:[#allocation2 + $0x30] sm:$0xff]
  %v41 = vld [vmem:[#allocation2 + $0x38] sm:$0xff]
  %v42 = vld [vmem:[#allocation2 + $0x40] sm:$0xff]
  %v43 = vld [vmem:[#allocation2 + $0x48] sm:$0xff]
  %v44 = vld [vmem:[#allocation2 + $0x50] sm:$0xff]
  %v45 = vld [vmem:[#allocation2 + $0x58] sm:$0xff]
  %v46 = vld [vmem:[#allocation2 + $0x60] sm:$0xff]
  %v47 = vld [vmem:[#allocation2 + $0x68] sm:$0xff]
  %v48 = vld [vmem:[#allocation2 + $0x70] sm:$0xff]
  %v49 = vld [vmem:[#allocation2 + $0x78] sm:$0xff]
  %v50 = vld [vmem:[%s0] sm:$0xff]
  %v51 = vld [vmem:[%s0 + $0x8] sm:$0xff]
  %v52 = vld [vmem:[%s0 + $0x10] sm:$0xff]
  %v53 = vld [vmem:[%s0 + $0x18] sm:$0xff]
  %v54 = vld [vmem:[%s0 + $0x20] sm:$0xff]
  %v55 = vld [vmem:[%s0 + $0x28] sm:$0xff]
  %v56 = vld [vmem:[%s0 + $0x30] sm:$0xff]
  %v57 = vld [vmem:[%s0 + $0x38] sm:$0xff]
  %v58 = vld [vmem:[%s0 + $0x40] sm:$0xff]
  %v59 = vld [vmem:[%s0 + $0x48] sm:$0xff]
  %v60 = vld [vmem:[%s0 + $0x50] sm:$0xff]
  %v61 = vld [vmem:[%s0 + $0x58] sm:$0xff]
  %v62 = vld [vmem:[%s0 + $0x60] sm:$0xff]
  %v63 = vld [vmem:[%s0 + $0x68] sm:$0xff]
  %v64 = vld [vmem:[%s0 + $0x70] sm:$0xff]
  %v65 = vld [vmem:[%s0 + $0x78] sm:$0xff]
  %v66 = vld [vmem:[%s1] sm:$0xff]
  %v67 = vld [vmem:[%s1 + $0x8] sm:$0xff]
  %v68 = vld [vmem:[%s1 + $0x10] sm:$0xff]
  %v69 = vld [vmem:[%s1 + $0x18] sm:$0xff]
  %v70 = vld [vmem:[%s1 + $0x20] sm:$0xff]
  %v71 = vld [vmem:[%s1 + $0x28] sm:$0xff]
  %v72 = vld [vmem:[%s1 + $0x30] sm:$0xff]
  %v73 = vld [vmem:[%s1 + $0x38] sm:$0xff]
  %v74 = vld [vmem:[%s1 + $0x40] sm:$0xff]
  %v75 = vld [vmem:[%s1 + $0x48] sm:$0xff]
  %v76 = vld [vmem:[%s1 + $0x50] sm:$0xff]
  %v77 = vld [vmem:[%s1 + $0x58] sm:$0xff]
  %v78 = vld [vmem:[%s1 + $0x60] sm:$0xff]
  %v79 = vld [vmem:[%s1 + $0x68] sm:$0xff]
  %v80 = vld [vmem:[%s1 + $0x70] sm:$0xff]
  %v81 = vld [vmem:[%s1 + $0x78] sm:$0xff]
  %82 = vmatpush.msra.mxu0 %v81
  %83 = vmatpush.msra.mxu0 %v80
  %84 = vmatpush.msra.mxu0 %v79
  %85 = vmatpush.msra.mxu0 %v78
  %86 = vmatpush.msra.mxu0 %v77
  %87 = vmatpush.msra.mxu0 %v76
  %88 = vmatpush.msra.mxu0 %v75
  %89 = vmatpush.msra.mxu0 %v74
  %90 = vmatpush.msra.mxu0 %v73
  %91 = vmatpush.msra.mxu0 %v72
  %92 = vmatpush.msra.mxu0 %v71
  %93 = vmatpush.msra.mxu0 %v70
  %94 = vmatpush.msra.mxu0 %v69
  %95 = vmatpush.msra.mxu0 %v68
  %96 = vmatpush.msra.mxu0 %v67
  %97 = vmatpush.msra.mxu0 %v66
  %98 = vmatmul.f32.gmra.mxu0 %v50
  %v99 = vpop.f32.mrf.mxu0
  %v100 = vadd.f32 0.0, %v99
  %101 = vmatmul.f32.gmra.mxu0 %v51
  %v102 = vpop.f32.mrf.mxu0
  %v103 = vadd.f32 0.0, %v102
  %104 = vmatmul.f32.gmra.mxu0 %v52
  %v105 = vpop.f32.mrf.mxu0
  %v106 = vadd.f32 0.0, %v105
  %107 = vmatmul.f32.gmra.mxu0 %v53
  %v108 = vpop.f32.mrf.mxu0
  %v109 = vadd.f32 0.0, %v108
  %110 = vmatmul.f32.gmra.mxu0 %v54
  %v111 = vpop.f32.mrf.mxu0
  %v112 = vadd.f32 0.0, %v111
  %113 = vmatmul.f32.gmra.mxu0 %v55
  %v114 = vpop.f32.mrf.mxu0
  %v115 = vadd.f32 0.0, %v114
  %116 = vmatmul.f32.gmra.mxu0 %v56
  %v117 = vpop.f32.mrf.mxu0
  %v118 = vadd.f32 0.0, %v117
  %119 = vmatmul.f32.gmra.mxu0 %v57
  %v120 = vpop.f32.mrf.mxu0
  %v121 = vadd.f32 0.0, %v120
  %122 = vmatmul.f32.gmra.mxu0 %v58
  %v123 = vpop.f32.mrf.mxu0
  %v124 = vadd.f32 0.0, %v123
  %125 = vmatmul.f32.gmra.mxu0 %v59
  %v126 = vpop.f32.mrf.mxu0
  %v127 = vadd.f32 0.0, %v126
  %128 = vmatmul.f32.gmra.mxu0 %v60
  %v129 = vpop.f32.mrf.mxu0
  %v130 = vadd.f32 0.0, %v129
  %131 = vmatmul.f32.gmra.mxu0 %v61
  %v132 = vpop.f32.mrf.mxu0
  %v133 = vadd.f32 0.0, %v132
  %134 = vmatmul.f32.gmra.mxu0 %v62
  %v135 = vpop.f32.mrf.mxu0
  %v136 = vadd.f32 0.0, %v135
  %137 = vmatmul.f32.gmra.mxu0 %v63
  %v138 = vpop.f32.mrf.mxu0
  %v139 = vadd.f32 0.0, %v138
  %140 = vmatmul.f32.gmra.mxu0 %v64
  %v141 = vpop.f32.mrf.mxu0
  %v142 = vadd.f32 0.0, %v141
  %143 = vmatmul.f32.gmra.mxu0 %v65
  %v144 = vpop.f32.mrf.mxu0
  %v145 = vadd.f32 0.0, %v144
  %146 = vdwg.mxu0
  %v147 = vadd.f32 %v34, %v100
  %v148 = vadd.f32 %v35, %v103
  %v149 = vadd.f32 %v36, %v106
  %v150 = vadd.f32 %v37, %v109
  %v151 = vadd.f32 %v38, %v112
  %v152 = vadd.f32 %v39, %v115
  %v153 = vadd.f32 %v40, %v118
  %v154 = vadd.f32 %v41, %v121
  %v155 = vadd.f32 %v42, %v124
  %v156 = vadd.f32 %v43, %v127
  %v157 = vadd.f32 %v44, %v130
  %v158 = vadd.f32 %v45, %v133
  %v159 = vadd.f32 %v46, %v136
  %v160 = vadd.f32 %v47, %v139
  %v161 = vadd.f32 %v48, %v142
  %v162 = vadd.f32 %v49, %v145
  %163 = vst [vmem:[#allocation2] sm:$0xff] %v147
  %164 = vst [vmem:[#allocation2 + $0x8] sm:$0xff] %v148
  %165 = vst [vmem:[#allocation2 + $0x10] sm:$0xff] %v149
  %166 = vst [vmem:[#allocation2 + $0x18] sm:$0xff] %v150
  %167 = vst [vmem:[#allocation2 + $0x20] sm:$0xff] %v151
  %168 = vst [vmem:[#allocation2 + $0x28] sm:$0xff] %v152
  %169 = vst [vmem:[#allocation2 + $0x30] sm:$0xff] %v153
  %170 = vst [vmem:[#allocation2 + $0x38] sm:$0xff] %v154
  %171 = vst [vmem:[#allocation2 + $0x40] sm:$0xff] %v155
  %172 = vst [vmem:[#allocation2 + $0x48] sm:$0xff] %v156
  %173 = vst [vmem:[#allocation2 + $0x50] sm:$0xff] %v157
  %174 = vst [vmem:[#allocation2 + $0x58] sm:$0xff] %v158
  %175 = vst [vmem:[#allocation2 + $0x60] sm:$0xff] %v159
  %176 = vst [vmem:[#allocation2 + $0x68] sm:$0xff] %v160
  %177 = vst [vmem:[#allocation2 + $0x70] sm:$0xff] %v161
  %178 = vst [vmem:[#allocation2 + $0x78] sm:$0xff] %v162
  // Predicated region
  $region18: #{hypergcn_forward.7} parent=0 // pred_check
    %p179 = pneg %p14
  $region19: #{hypergcn_forward.7} parent=0 // pred_check_branch
    %181 = sbr.rel (%p179) target = $region21
  $region20: #{hypergcn_forward.7} parent=0 // pred_region
    %v182 = vld [vmem:[#allocation2] sm:$0xff]
    %v183 = vld [vmem:[#allocation2 + $0x8] sm:$0xff]
    %v184 = vld [vmem:[#allocation2 + $0x10] sm:$0xff]
    %v185 = vld [vmem:[#allocation2 + $0x18] sm:$0xff]
    %v186 = vld [vmem:[#allocation2 + $0x20] sm:$0xff]
    %v187 = vld [vmem:[#allocation2 + $0x28] sm:$0xff]
    %v188 = vld [vmem:[#allocation2 + $0x30] sm:$0xff]
    %v189 = vld [vmem:[#allocation2 + $0x38] sm:$0xff]
    %v190 = vld [vmem:[#allocation2 + $0x40] sm:$0xff]
    %v191 = vld [vmem:[#allocation2 + $0x48] sm:$0xff]
    %v192 = vld [vmem:[#allocation2 + $0x50] sm:$0xff]
    %v193 = vld [vmem:[#allocation2 + $0x58] sm:$0xff]
    %v194 = vld [vmem:[#allocation2 + $0x60] sm:$0xff]
    %v195 = vld [vmem:[#allocation2 + $0x68] sm:$0xff]
    %v196 = vld [vmem:[#allocation2 + $0x70] sm:$0xff]
    %v197 = vld [vmem:[#allocation2 + $0x78] sm:$0xff]
    %v198 = vld [vmem:[%s2] sm:$0xff]
    %v199 = vld [vmem:[%s2 + $0x8] sm:$0xff]
    %v200 = vld [vmem:[%s2 + $0x10] sm:$0xff]
    %v201 = vld [vmem:[%s2 + $0x18] sm:$0xff]
    %v202 = vld [vmem:[%s2 + $0x20] sm:$0xff]
    %v203 = vld [vmem:[%s2 + $0x28] sm:$0xff]
    %v204 = vld [vmem:[%s2 + $0x30] sm:$0xff]
    %v205 = vld [vmem:[%s2 + $0x38] sm:$0xff]
    %v206 = vld [vmem:[%s2 + $0x40] sm:$0xff]
    %v207 = vld [vmem:[%s2 + $0x48] sm:$0xff]
    %v208 = vld [vmem:[%s2 + $0x50] sm:$0xff]
    %v209 = vld [vmem:[%s2 + $0x58] sm:$0xff]
    %v210 = vld [vmem:[%s2 + $0x60] sm:$0xff]
    %v211 = vld [vmem:[%s2 + $0x68] sm:$0xff]
    %v212 = vld [vmem:[%s2 + $0x70] sm:$0xff]
    %v213 = vld [vmem:[%s2 + $0x78] sm:$0xff]
    %215 = vset.pattern.permute.xlu0 0
    %216 = vperm.xlu0 %215, %v198
    %v217 = vpop.permute.xlu0 %216
    %220 = vset.pattern.permute.xlu0 0
    %221 = vperm.xlu0 %220, %v199
    %v222 = vpop.permute.xlu0 %221
    %225 = vset.pattern.permute.xlu0 0
    %226 = vperm.xlu0 %225, %v200
    %v227 = vpop.permute.xlu0 %226
    %230 = vset.pattern.permute.xlu0 0
    %231 = vperm.xlu0 %230, %v201
    %v232 = vpop.permute.xlu0 %231
    %235 = vset.pattern.permute.xlu0 0
    %236 = vperm.xlu0 %235, %v202
    %v237 = vpop.permute.xlu0 %236
    %240 = vset.pattern.permute.xlu0 0
    %241 = vperm.xlu0 %240, %v203
    %v242 = vpop.permute.xlu0 %241
    %245 = vset.pattern.permute.xlu0 0
    %246 = vperm.xlu0 %245, %v204
    %v247 = vpop.permute.xlu0 %246
    %250 = vset.pattern.permute.xlu0 0
    %251 = vperm.xlu0 %250, %v205
    %v252 = vpop.permute.xlu0 %251
    %255 = vset.pattern.permute.xlu0 0
    %256 = vperm.xlu0 %255, %v206
    %v257 = vpop.permute.xlu0 %256
    %260 = vset.pattern.permute.xlu0 0
    %261 = vperm.xlu0 %260, %v207
    %v262 = vpop.permute.xlu0 %261
    %265 = vset.pattern.permute.xlu0 0
    %266 = vperm.xlu0 %265, %v208
    %v267 = vpop.permute.xlu0 %266
    %270 = vset.pattern.permute.xlu0 0
    %271 = vperm.xlu0 %270, %v209
    %v272 = vpop.permute.xlu0 %271
    %275 = vset.pattern.permute.xlu0 0
    %276 = vperm.xlu0 %275, %v210
    %v277 = vpop.permute.xlu0 %276
    %280 = vset.pattern.permute.xlu0 0
    %281 = vperm.xlu0 %280, %v211
    %v282 = vpop.permute.xlu0 %281
    %285 = vset.pattern.permute.xlu0 0
    %286 = vperm.xlu0 %285, %v212
    %v287 = vpop.permute.xlu0 %286
    %290 = vset.pattern.permute.xlu0 0
    %291 = vperm.xlu0 %290, %v213
    %v292 = vpop.permute.xlu0 %291
    %v294 = vmul.f32 %v182, %v217
    %v295 = vmul.f32 %v183, %v222
    %v296 = vmul.f32 %v184, %v227
    %v297 = vmul.f32 %v185, %v232
    %v298 = vmul.f32 %v186, %v237
    %v299 = vmul.f32 %v187, %v242
    %v300 = vmul.f32 %v188, %v247
    %v301 = vmul.f32 %v189, %v252
    %v302 = vmul.f32 %v190, %v257
    %v303 = vmul.f32 %v191, %v262
    %v304 = vmul.f32 %v192, %v267
    %v305 = vmul.f32 %v193, %v272
    %v306 = vmul.f32 %v194, %v277
    %v307 = vmul.f32 %v195, %v282
    %v308 = vmul.f32 %v196, %v287
    %v309 = vmul.f32 %v197, %v292
    %310 = vst [vmem:[%s3] sm:$0xff] %v294
    %311 = vst [vmem:[%s3 + $0x8] sm:$0xff] %v295
    %312 = vst [vmem:[%s3 + $0x10] sm:$0xff] %v296
    %313 = vst [vmem:[%s3 + $0x18] sm:$0xff] %v297
    %314 = vst [vmem:[%s3 + $0x20] sm:$0xff] %v298
    %315 = vst [vmem:[%s3 + $0x28] sm:$0xff] %v299
    %316 = vst [vmem:[%s3 + $0x30] sm:$0xff] %v300
    %317 = vst [vmem:[%s3 + $0x38] sm:$0xff] %v301
    %318 = vst [vmem:[%s3 + $0x40] sm:$0xff] %v302
    %319 = vst [vmem:[%s3 + $0x48] sm:$0xff] %v303
    %320 = vst [vmem:[%s3 + $0x50] sm:$0xff] %v304
    %321 = vst [vmem:[%s3 + $0x58] sm:$0xff] %v305
    %322 = vst [vmem:[%s3 + $0x60] sm:$0xff] %v306
    %323 = vst [vmem:[%s3 + $0x68] sm:$0xff] %v307
    %324 = vst [vmem:[%s3 + $0x70] sm:$0xff] %v308
    %325 = vst [vmem:[%s3 + $0x78] sm:$0xff] %v309
  $region21: #{hypergcn_forward.7} parent=0 // pred_fallthru
    _
  // Predicated region
  $region22: #{hypergcn_forward.7} parent=0 // pred_check
    _
  $region23: #{hypergcn_forward.7} parent=0 // pred_check_branch
    %327 = sbr.rel (0) target = $region25
  $region24: #{hypergcn_forward.7} parent=0 // pred_region
    _
  $region25: #{hypergcn_forward.7} parent=0 // pred_fallthru
    _
  // Predicated region
  $region26: #{hypergcn_forward.7} parent=0 // pred_check
    _
  $region27: #{hypergcn_forward.7} parent=0 // pred_check_branch
    %329 = sbr.rel (0) target = $region29
  $region28: #{hypergcn_forward.7} parent=0 // pred_region
    _
  $region29: #{hypergcn_forward.7} parent=0 // pred_fallthru
    _

// kernel: hypergcn_forward.8
$region0: #{hypergcn_forward.8}
  #allocation0 [shape = 'u32[]', space=smem, size = 0x4, offset = 0x4, fixed_abs, tag = 'smem constant byte address 0x4 - core index']
  #allocation1 [shape = 'u32[72,128]{1,0:T(1,128)}', space=vmem, size = 0x9000, scoped, tag = 'internal scratch']
  %s0 = inlined_call_operand.vmem [shape: f32[128,128], index: 0, kind: input, shape index: {}]
  %s1 = inlined_call_operand.vmem [shape: f32[128,128], index: 1, kind: input, shape index: {}]
  %s2 = inlined_call_operand.vmem [shape: f32[128,1], index: 2, kind: input, shape index: {}]
  %s3 = inlined_call_operand.vmem [shape: f32[1,128], index: 3, kind: input, shape index: {}]
  %s4 = inlined_call_operand.vmem [shape: f32[128,128], index: 4, kind: output, shape index: {}]
  %s5 = sld [smem:[#allocation0]]
  $region26: #{hypergcn_forward.8} parent=0
    _
  %s7 = ssub.s32 1, %s5
  %s8 = scalar_select 0, %s7, %s5
  // Predicated region
  $region2: #{hypergcn_forward.8} parent=0 // pred_check
    _
  $region3: #{hypergcn_forward.8} parent=0 // pred_check_branch
    %10 = sbr.rel (0) target = $region5
  $region4: #{hypergcn_forward.8} parent=0 // pred_region
    _
  $region5: #{hypergcn_forward.8} parent=0 // pred_fallthru
    _
  // Predicated region
  $region6: #{hypergcn_forward.8} parent=0 // pred_check
    _
  $region7: #{hypergcn_forward.8} parent=0 // pred_check_branch
    %12 = sbr.rel (0) target = $region9
  $region8: #{hypergcn_forward.8} parent=0 // pred_region
    _
  $region9: #{hypergcn_forward.8} parent=0 // pred_fallthru
    _
  // Predicated region
  $region10: #{hypergcn_forward.8} parent=0 // pred_check
    _
  $region11: #{hypergcn_forward.8} parent=0 // pred_check_branch
    %14 = sbr.rel (0) target = $region13
  $region12: #{hypergcn_forward.8} parent=0 // pred_region
    _
  $region13: #{hypergcn_forward.8} parent=0 // pred_fallthru
    _
  // Predicated region
  $region14: #{hypergcn_forward.8} parent=0 // pred_check
    _
  $region15: #{hypergcn_forward.8} parent=0 // pred_check_branch
    %16 = sbr.rel (0) target = $region17
  $region16: #{hypergcn_forward.8} parent=0 // pred_region
    _
  $region17: #{hypergcn_forward.8} parent=0 // pred_fallthru
    _
  %v17 = vld [vmem:[%s0] sm:$0xff]
  %v18 = vld [vmem:[%s0 + $0x8] sm:$0xff]
  %v19 = vld [vmem:[%s0 + $0x10] sm:$0xff]
  %v20 = vld [vmem:[%s0 + $0x18] sm:$0xff]
  %v21 = vld [vmem:[%s0 + $0x20] sm:$0xff]
  %v22 = vld [vmem:[%s0 + $0x28] sm:$0xff]
  %v23 = vld [vmem:[%s0 + $0x30] sm:$0xff]
  %v24 = vld [vmem:[%s0 + $0x38] sm:$0xff]
  %v25 = vld [vmem:[%s0 + $0x40] sm:$0xff]
  %v26 = vld [vmem:[%s0 + $0x48] sm:$0xff]
  %v27 = vld [vmem:[%s0 + $0x50] sm:$0xff]
  %v28 = vld [vmem:[%s0 + $0x58] sm:$0xff]
  %v29 = vld [vmem:[%s0 + $0x60] sm:$0xff]
  %v30 = vld [vmem:[%s0 + $0x68] sm:$0xff]
  %v31 = vld [vmem:[%s0 + $0x70] sm:$0xff]
  %v32 = vld [vmem:[%s0 + $0x78] sm:$0xff]
  %v33 = vld [vmem:[%s1] sm:$0xff]
  %v34 = vld [vmem:[%s1 + $0x8] sm:$0xff]
  %v35 = vld [vmem:[%s1 + $0x10] sm:$0xff]
  %v36 = vld [vmem:[%s1 + $0x18] sm:$0xff]
  %v37 = vld [vmem:[%s1 + $0x20] sm:$0xff]
  %v38 = vld [vmem:[%s1 + $0x28] sm:$0xff]
  %v39 = vld [vmem:[%s1 + $0x30] sm:$0xff]
  %v40 = vld [vmem:[%s1 + $0x38] sm:$0xff]
  %v41 = vld [vmem:[%s1 + $0x40] sm:$0xff]
  %v42 = vld [vmem:[%s1 + $0x48] sm:$0xff]
  %v43 = vld [vmem:[%s1 + $0x50] sm:$0xff]
  %v44 = vld [vmem:[%s1 + $0x58] sm:$0xff]
  %v45 = vld [vmem:[%s1 + $0x60] sm:$0xff]
  %v46 = vld [vmem:[%s1 + $0x68] sm:$0xff]
  %v47 = vld [vmem:[%s1 + $0x70] sm:$0xff]
  %v48 = vld [vmem:[%s1 + $0x78] sm:$0xff]
  %49 = vmatpush.msra.mxu0 %v48
  %50 = vmatpush.msra.mxu0 %v47
  %51 = vmatpush.msra.mxu0 %v46
  %52 = vmatpush.msra.mxu0 %v45
  %53 = vmatpush.msra.mxu0 %v44
  %54 = vmatpush.msra.mxu0 %v43
  %55 = vmatpush.msra.mxu0 %v42
  %56 = vmatpush.msra.mxu0 %v41
  %57 = vmatpush.msra.mxu0 %v40
  %58 = vmatpush.msra.mxu0 %v39
  %59 = vmatpush.msra.mxu0 %v38
  %60 = vmatpush.msra.mxu0 %v37
  %61 = vmatpush.msra.mxu0 %v36
  %62 = vmatpush.msra.mxu0 %v35
  %63 = vmatpush.msra.mxu0 %v34
  %64 = vmatpush.msra.mxu0 %v33
  %65 = vmatmul.f32.gmra.mxu0 %v17
  %v66 = vpop.f32.mrf.mxu0
  %v67 = vadd.f32 0.0, %v66
  %68 = vmatmul.f32.gmra.mxu0 %v18
  %v69 = vpop.f32.mrf.mxu0
  %v70 = vadd.f32 0.0, %v69
  %71 = vmatmul.f32.gmra.mxu0 %v19
  %v72 = vpop.f32.mrf.mxu0
  %v73 = vadd.f32 0.0, %v72
  %74 = vmatmul.f32.gmra.mxu0 %v20
  %v75 = vpop.f32.mrf.mxu0
  %v76 = vadd.f32 0.0, %v75
  %77 = vmatmul.f32.gmra.mxu0 %v21
  %v78 = vpop.f32.mrf.mxu0
  %v79 = vadd.f32 0.0, %v78
  %80 = vmatmul.f32.gmra.mxu0 %v22
  %v81 = vpop.f32.mrf.mxu0
  %v82 = vadd.f32 0.0, %v81
  %83 = vmatmul.f32.gmra.mxu0 %v23
  %v84 = vpop.f32.mrf.mxu0
  %v85 = vadd.f32 0.0, %v84
  %86 = vmatmul.f32.gmra.mxu0 %v24
  %v87 = vpop.f32.mrf.mxu0
  %v88 = vadd.f32 0.0, %v87
  %89 = vmatmul.f32.gmra.mxu0 %v25
  %v90 = vpop.f32.mrf.mxu0
  %v91 = vadd.f32 0.0, %v90
  %92 = vmatmul.f32.gmra.mxu0 %v26
  %v93 = vpop.f32.mrf.mxu0
  %v94 = vadd.f32 0.0, %v93
  %95 = vmatmul.f32.gmra.mxu0 %v27
  %v96 = vpop.f32.mrf.mxu0
  %v97 = vadd.f32 0.0, %v96
  %98 = vmatmul.f32.gmra.mxu0 %v28
  %v99 = vpop.f32.mrf.mxu0
  %v100 = vadd.f32 0.0, %v99
  %101 = vmatmul.f32.gmra.mxu0 %v29
  %v102 = vpop.f32.mrf.mxu0
  %v103 = vadd.f32 0.0, %v102
  %104 = vmatmul.f32.gmra.mxu0 %v30
  %v105 = vpop.f32.mrf.mxu0
  %v106 = vadd.f32 0.0, %v105
  %107 = vmatmul.f32.gmra.mxu0 %v31
  %v108 = vpop.f32.mrf.mxu0
  %v109 = vadd.f32 0.0, %v108
  %110 = vmatmul.f32.gmra.mxu0 %v32
  %v111 = vpop.f32.mrf.mxu0
  %v112 = vadd.f32 0.0, %v111
  %113 = vdwg.mxu0
  %v114 = vld [vmem:[%s2] sm:$0xff]
  %v115 = vld [vmem:[%s2 + $0x8] sm:$0xff]
  %v116 = vld [vmem:[%s2 + $0x10] sm:$0xff]
  %v117 = vld [vmem:[%s2 + $0x18] sm:$0xff]
  %v118 = vld [vmem:[%s2 + $0x20] sm:$0xff]
  %v119 = vld [vmem:[%s2 + $0x28] sm:$0xff]
  %v120 = vld [vmem:[%s2 + $0x30] sm:$0xff]
  %v121 = vld [vmem:[%s2 + $0x38] sm:$0xff]
  %v122 = vld [vmem:[%s2 + $0x40] sm:$0xff]
  %v123 = vld [vmem:[%s2 + $0x48] sm:$0xff]
  %v124 = vld [vmem:[%s2 + $0x50] sm:$0xff]
  %v125 = vld [vmem:[%s2 + $0x58] sm:$0xff]
  %v126 = vld [vmem:[%s2 + $0x60] sm:$0xff]
  %v127 = vld [vmem:[%s2 + $0x68] sm:$0xff]
  %v128 = vld [vmem:[%s2 + $0x70] sm:$0xff]
  %v129 = vld [vmem:[%s2 + $0x78] sm:$0xff]
  %131 = vset.pattern.permute.xlu0 0
  %132 = vperm.xlu0 %131, %v114
  %v133 = vpop.permute.xlu0 %132
  %136 = vset.pattern.permute.xlu0 0
  %137 = vperm.xlu0 %136, %v115
  %v138 = vpop.permute.xlu0 %137
  %141 = vset.pattern.permute.xlu0 0
  %142 = vperm.xlu0 %141, %v116
  %v143 = vpop.permute.xlu0 %142
  %146 = vset.pattern.permute.xlu0 0
  %147 = vperm.xlu0 %146, %v117
  %v148 = vpop.permute.xlu0 %147
  %151 = vset.pattern.permute.xlu0 0
  %152 = vperm.xlu0 %151, %v118
  %v153 = vpop.permute.xlu0 %152
  %156 = vset.pattern.permute.xlu0 0
  %157 = vperm.xlu0 %156, %v119
  %v158 = vpop.permute.xlu0 %157
  %161 = vset.pattern.permute.xlu0 0
  %162 = vperm.xlu0 %161, %v120
  %v163 = vpop.permute.xlu0 %162
  %166 = vset.pattern.permute.xlu0 0
  %167 = vperm.xlu0 %166, %v121
  %v168 = vpop.permute.xlu0 %167
  %171 = vset.pattern.permute.xlu0 0
  %172 = vperm.xlu0 %171, %v122
  %v173 = vpop.permute.xlu0 %172
  %176 = vset.pattern.permute.xlu0 0
  %177 = vperm.xlu0 %176, %v123
  %v178 = vpop.permute.xlu0 %177
  %181 = vset.pattern.permute.xlu0 0
  %182 = vperm.xlu0 %181, %v124
  %v183 = vpop.permute.xlu0 %182
  %186 = vset.pattern.permute.xlu0 0
  %187 = vperm.xlu0 %186, %v125
  %v188 = vpop.permute.xlu0 %187
  %191 = vset.pattern.permute.xlu0 0
  %192 = vperm.xlu0 %191, %v126
  %v193 = vpop.permute.xlu0 %192
  %196 = vset.pattern.permute.xlu0 0
  %197 = vperm.xlu0 %196, %v127
  %v198 = vpop.permute.xlu0 %197
  %201 = vset.pattern.permute.xlu0 0
  %202 = vperm.xlu0 %201, %v128
  %v203 = vpop.permute.xlu0 %202
  %206 = vset.pattern.permute.xlu0 0
  %207 = vperm.xlu0 %206, %v129
  %v208 = vpop.permute.xlu0 %207
  %v210 = vmul.f32 %v67, %v133
  %v211 = vmul.f32 %v70, %v138
  %v212 = vmul.f32 %v73, %v143
  %v213 = vmul.f32 %v76, %v148
  %v214 = vmul.f32 %v79, %v153
  %v215 = vmul.f32 %v82, %v158
  %v216 = vmul.f32 %v85, %v163
  %v217 = vmul.f32 %v88, %v168
  %v218 = vmul.f32 %v91, %v173
  %v219 = vmul.f32 %v94, %v178
  %v220 = vmul.f32 %v97, %v183
  %v221 = vmul.f32 %v100, %v188
  %v222 = vmul.f32 %v103, %v193
  %v223 = vmul.f32 %v106, %v198
  %v224 = vmul.f32 %v109, %v203
  %v225 = vmul.f32 %v112, %v208
  %v226 = vld [vmem:[%s3] sm:$0x1]
  %v228 = vperm.slane %v226, 0
  %v230 = vadd.f32 %v210, %v228
  %v231 = vadd.f32 %v211, %v228
  %v232 = vadd.f32 %v212, %v228
  %v233 = vadd.f32 %v213, %v228
  %v234 = vadd.f32 %v214, %v228
  %v235 = vadd.f32 %v215, %v228
  %v236 = vadd.f32 %v216, %v228
  %v237 = vadd.f32 %v217, %v228
  %v238 = vadd.f32 %v218, %v228
  %v239 = vadd.f32 %v219, %v228
  %v240 = vadd.f32 %v220, %v228
  %v241 = vadd.f32 %v221, %v228
  %v242 = vadd.f32 %v222, %v228
  %v243 = vadd.f32 %v223, %v228
  %v244 = vadd.f32 %v224, %v228
  %v245 = vadd.f32 %v225, %v228
  %v246 = vmul.f32 %v230, %v230
  %v247 = vmul.f32 %v231, %v231
  %v248 = vmul.f32 %v232, %v232
  %v249 = vmul.f32 %v233, %v233
  %v250 = vmul.f32 %v234, %v234
  %v251 = vmul.f32 %v235, %v235
  %v252 = vmul.f32 %v236, %v236
  %v253 = vmul.f32 %v237, %v237
  %v254 = vmul.f32 %v238, %v238
  %v255 = vmul.f32 %v239, %v239
  %v256 = vmul.f32 %v240, %v240
  %v257 = vmul.f32 %v241, %v241
  %v258 = vmul.f32 %v242, %v242
  %v259 = vmul.f32 %v243, %v243
  %v260 = vmul.f32 %v244, %v244
  %v261 = vmul.f32 %v245, %v245
  %262 = vadd.xlane.f32.xlu0 %v246
  %v263 = vpop.xlane.xlu0 %262
  %264 = vadd.xlane.f32.xlu0 %v247
  %v265 = vpop.xlane.xlu0 %264
  %266 = vadd.xlane.f32.xlu0 %v248
  %v267 = vpop.xlane.xlu0 %266
  %268 = vadd.xlane.f32.xlu0 %v249
  %v269 = vpop.xlane.xlu0 %268
  %270 = vadd.xlane.f32.xlu0 %v250
  %v271 = vpop.xlane.xlu0 %270
  %272 = vadd.xlane.f32.xlu0 %v251
  %v273 = vpop.xlane.xlu0 %272
  %274 = vadd.xlane.f32.xlu0 %v252
  %v275 = vpop.xlane.xlu0 %274
  %276 = vadd.xlane.f32.xlu0 %v253
  %v277 = vpop.xlane.xlu0 %276
  %278 = vadd.xlane.f32.xlu0 %v254
  %v279 = vpop.xlane.xlu0 %278
  %280 = vadd.xlane.f32.xlu0 %v255
  %v281 = vpop.xlane.xlu0 %280
  %282 = vadd.xlane.f32.xlu0 %v256
  %v283 = vpop.xlane.xlu0 %282
  %284 = vadd.xlane.f32.xlu0 %v257
  %v285 = vpop.xlane.xlu0 %284
  %286 = vadd.xlane.f32.xlu0 %v258
  %v287 = vpop.xlane.xlu0 %286
  %288 = vadd.xlane.f32.xlu0 %v259
  %v289 = vpop.xlane.xlu0 %288
  %290 = vadd.xlane.f32.xlu0 %v260
  %v291 = vpop.xlane.xlu0 %290
  %292 = vadd.xlane.f32.xlu0 %v261
  %v293 = vpop.xlane.xlu0 %292
  %v294 = vmax.f32 %v263, 1e-24
  %v295 = vmax.f32 %v265, 1e-24
  %v296 = vmax.f32 %v267, 1e-24
  %v297 = vmax.f32 %v269, 1e-24
  %v298 = vmax.f32 %v271, 1e-24
  %v299 = vmax.f32 %v273, 1e-24
  %v300 = vmax.f32 %v275, 1e-24
  %v301 = vmax.f32 %v277, 1e-24
  %v302 = vmax.f32 %v279, 1e-24
  %v303 = vmax.f32 %v281, 1e-24
  %v304 = vmax.f32 %v283, 1e-24
  %v305 = vmax.f32 %v285, 1e-24
  %v306 = vmax.f32 %v287, 1e-24
  %v307 = vmax.f32 %v289, 1e-24
  %v308 = vmax.f32 %v291, 1e-24
  %v309 = vmax.f32 %v293, 1e-24
  %v310 = vrsqrt.pop %v294
  %v311 = vmul.f32 %v310, %v294
  %v312 = vmul.f32 %v311, %v310
  %v313 = vmul.f32 0.5, %v312
  %v314 = vsub.f32 1.5, %v313
  %v315 = vmul.f32 %v310, %v314
  %vm316 = vweird.f32 %v294
  %vm317 = vweird.f32 %v310
  %vm318 = vmor %vm316, %vm317
  %v319 = vsel %vm318, %v310, %v315
  %v320 = vrsqrt.pop %v295
  %v321 = vmul.f32 %v320, %v295
  %v322 = vmul.f32 %v321, %v320
  %v323 = vmul.f32 0.5, %v322
  %v324 = vsub.f32 1.5, %v323
  %v325 = vmul.f32 %v320, %v324
  %vm326 = vweird.f32 %v295
  %vm327 = vweird.f32 %v320
  %vm328 = vmor %vm326, %vm327
  %v329 = vsel %vm328, %v320, %v325
  %v330 = vrsqrt.pop %v296
  %v331 = vmul.f32 %v330, %v296
  %v332 = vmul.f32 %v331, %v330
  %v333 = vmul.f32 0.5, %v332
  %v334 = vsub.f32 1.5, %v333
  %v335 = vmul.f32 %v330, %v334
  %vm336 = vweird.f32 %v296
  %vm337 = vweird.f32 %v330
  %vm338 = vmor %vm336, %vm337
  %v339 = vsel %vm338, %v330, %v335
  %v340 = vrsqrt.pop %v297
  %v341 = vmul.f32 %v340, %v297
  %v342 = vmul.f32 %v341, %v340
  %v343 = vmul.f32 0.5, %v342
  %v344 = vsub.f32 1.5, %v343
  %v345 = vmul.f32 %v340, %v344
  %vm346 = vweird.f32 %v297
  %vm347 = vweird.f32 %v340
  %vm348 = vmor %vm346, %vm347
  %v349 = vsel %vm348, %v340, %v345
  %v350 = vrsqrt.pop %v298
  %v351 = vmul.f32 %v350, %v298
  %v352 = vmul.f32 %v351, %v350
  %v353 = vmul.f32 0.5, %v352
  %v354 = vsub.f32 1.5, %v353
  %v355 = vmul.f32 %v350, %v354
  %vm356 = vweird.f32 %v298
  %vm357 = vweird.f32 %v350
  %vm358 = vmor %vm356, %vm357
  %v359 = vsel %vm358, %v350, %v355
  %v360 = vrsqrt.pop %v299
  %v361 = vmul.f32 %v360, %v299
  %v362 = vmul.f32 %v361, %v360
  %v363 = vmul.f32 0.5, %v362
  %v364 = vsub.f32 1.5, %v363
  %v365 = vmul.f32 %v360, %v364
  %vm366 = vweird.f32 %v299
  %vm367 = vweird.f32 %v360
  %vm368 = vmor %vm366, %vm367
  %v369 = vsel %vm368, %v360, %v365
  %v370 = vrsqrt.pop %v300
  %v371 = vmul.f32 %v370, %v300
  %v372 = vmul.f32 %v371, %v370
  %v373 = vmul.f32 0.5, %v372
  %v374 = vsub.f32 1.5, %v373
  %v375 = vmul.f32 %v370, %v374
  %vm376 = vweird.f32 %v300
  %vm377 = vweird.f32 %v370
  %vm378 = vmor %vm376, %vm377
  %v379 = vsel %vm378, %v370, %v375
  %v380 = vrsqrt.pop %v301
  %v381 = vmul.f32 %v380, %v301
  %v382 = vmul.f32 %v381, %v380
  %v383 = vmul.f32 0.5, %v382
  %v384 = vsub.f32 1.5, %v383
  %v385 = vmul.f32 %v380, %v384
  %vm386 = vweird.f32 %v301
  %vm387 = vweird.f32 %v380
  %vm388 = vmor %vm386, %vm387
  %v389 = vsel %vm388, %v380, %v385
  %v390 = vrsqrt.pop %v302
  %v391 = vmul.f32 %v390, %v302
  %v392 = vmul.f32 %v391, %v390
  %v393 = vmul.f32 0.5, %v392
  %v394 = vsub.f32 1.5, %v393
  %v395 = vmul.f32 %v390, %v394
  %vm396 = vweird.f32 %v302
  %vm397 = vweird.f32 %v390
  %vm398 = vmor %vm396, %vm397
  %v399 = vsel %vm398, %v390, %v395
  %v400 = vrsqrt.pop %v303
  %v401 = vmul.f32 %v400, %v303
  %v402 = vmul.f32 %v401, %v400
  %v403 = vmul.f32 0.5, %v402
  %v404 = vsub.f32 1.5, %v403
  %v405 = vmul.f32 %v400, %v404
  %vm406 = vweird.f32 %v303
  %vm407 = vweird.f32 %v400
  %vm408 = vmor %vm406, %vm407
  %v409 = vsel %vm408, %v400, %v405
  %v410 = vrsqrt.pop %v304
  %v411 = vmul.f32 %v410, %v304
  %v412 = vmul.f32 %v411, %v410
  %v413 = vmul.f32 0.5, %v412
  %v414 = vsub.f32 1.5, %v413
  %v415 = vmul.f32 %v410, %v414
  %vm416 = vweird.f32 %v304
  %vm417 = vweird.f32 %v410
  %vm418 = vmor %vm416, %vm417
  %v419 = vsel %vm418, %v410, %v415
  %v420 = vrsqrt.pop %v305
  %v421 = vmul.f32 %v420, %v305
  %v422 = vmul.f32 %v421, %v420
  %v423 = vmul.f32 0.5, %v422
  %v424 = vsub.f32 1.5, %v423
  %v425 = vmul.f32 %v420, %v424
  %vm426 = vweird.f32 %v305
  %vm427 = vweird.f32 %v420
  %vm428 = vmor %vm426, %vm427
  %v429 = vsel %vm428, %v420, %v425
  %v430 = vrsqrt.pop %v306
  %v431 = vmul.f32 %v430, %v306
  %v432 = vmul.f32 %v431, %v430
  %v433 = vmul.f32 0.5, %v432
  %v434 = vsub.f32 1.5, %v433
  %v435 = vmul.f32 %v430, %v434
  %vm436 = vweird.f32 %v306
  %vm437 = vweird.f32 %v430
  %vm438 = vmor %vm436, %vm437
  %v439 = vsel %vm438, %v430, %v435
  %v440 = vrsqrt.pop %v307
  %v441 = vmul.f32 %v440, %v307
  %v442 = vmul.f32 %v441, %v440
  %v443 = vmul.f32 0.5, %v442
  %v444 = vsub.f32 1.5, %v443
  %v445 = vmul.f32 %v440, %v444
  %vm446 = vweird.f32 %v307
  %vm447 = vweird.f32 %v440
  %vm448 = vmor %vm446, %vm447
  %v449 = vsel %vm448, %v440, %v445
  %v450 = vrsqrt.pop %v308
  %v451 = vmul.f32 %v450, %v308
  %v452 = vmul.f32 %v451, %v450
  %v453 = vmul.f32 0.5, %v452
  %v454 = vsub.f32 1.5, %v453
  %v455 = vmul.f32 %v450, %v454
  %vm456 = vweird.f32 %v308
  %vm457 = vweird.f32 %v450
  %vm458 = vmor %vm456, %vm457
  %v459 = vsel %vm458, %v450, %v455
  %v460 = vrsqrt.pop %v309
  %v461 = vmul.f32 %v460, %v309
  %v462 = vmul.f32 %v461, %v460
  %v463 = vmul.f32 0.5, %v462
  %v464 = vsub.f32 1.5, %v463
  %v465 = vmul.f32 %v460, %v464
  %vm466 = vweird.f32 %v309
  %vm467 = vweird.f32 %v460
  %vm468 = vmor %vm466, %vm467
  %v469 = vsel %vm468, %v460, %v465
  %v470 = vmul.f32 %v230, %v319
  %v471 = vmul.f32 %v231, %v329
  %v472 = vmul.f32 %v232, %v339
  %v473 = vmul.f32 %v233, %v349
  %v474 = vmul.f32 %v234, %v359
  %v475 = vmul.f32 %v235, %v369
  %v476 = vmul.f32 %v236, %v379
  %v477 = vmul.f32 %v237, %v389
  %v478 = vmul.f32 %v238, %v399
  %v479 = vmul.f32 %v239, %v409
  %v480 = vmul.f32 %v240, %v419
  %v481 = vmul.f32 %v241, %v429
  %v482 = vmul.f32 %v242, %v439
  %v483 = vmul.f32 %v243, %v449
  %v484 = vmul.f32 %v244, %v459
  %v485 = vmul.f32 %v245, %v469
  %486 = vst [vmem:[%s4] sm:$0xff] %v470
  %487 = vst [vmem:[%s4 + $0x8] sm:$0xff] %v471
  %488 = vst [vmem:[%s4 + $0x10] sm:$0xff] %v472
  %489 = vst [vmem:[%s4 + $0x18] sm:$0xff] %v473
  %490 = vst [vmem:[%s4 + $0x20] sm:$0xff] %v474
  %491 = vst [vmem:[%s4 + $0x28] sm:$0xff] %v475
  %492 = vst [vmem:[%s4 + $0x30] sm:$0xff] %v476
  %493 = vst [vmem:[%s4 + $0x38] sm:$0xff] %v477
  %494 = vst [vmem:[%s4 + $0x40] sm:$0xff] %v478
  %495 = vst [vmem:[%s4 + $0x48] sm:$0xff] %v479
  %496 = vst [vmem:[%s4 + $0x50] sm:$0xff] %v480
  %497 = vst [vmem:[%s4 + $0x58] sm:$0xff] %v481
  %498 = vst [vmem:[%s4 + $0x60] sm:$0xff] %v482
  %499 = vst [vmem:[%s4 + $0x68] sm:$0xff] %v483
  %500 = vst [vmem:[%s4 + $0x70] sm:$0xff] %v484
  %501 = vst [vmem:[%s4 + $0x78] sm:$0xff] %v485
  // Predicated region
  $region18: #{hypergcn_forward.8} parent=0 // pred_check
    _
  $region19: #{hypergcn_forward.8} parent=0 // pred_check_branch
    %503 = sbr.rel (0) target = $region21
  $region20: #{hypergcn_forward.8} parent=0 // pred_region
    _
  $region21: #{hypergcn_forward.8} parent=0 // pred_fallthru
    _
  // Predicated region
  $region22: #{hypergcn_forward.8} parent=0 // pred_check
    _
  $region23: #{hypergcn_forward.8} parent=0 // pred_check_branch
    %505 = sbr.rel (0) target = $region25
  $region24: #{hypergcn_forward.8} parent=0 // pred_region
    _
  $region25: #{hypergcn_forward.8} parent=0 // pred_fallthru
    _

</llo_original>
